<compile_context>
chip_gen: v7x
topology: tpu7x:2x2x1
jax: 0.10.0
libtpu: 0.0.40
codegen_flags: <defaults>
</compile_context>

<pallas_src>
import jax
import jax.numpy as jnp
from jax.experimental import pallas as pl
from jax.experimental.pallas import tpu as pltpu

_LANES = 128
_TARGET_BLOCK_BYTES = 8 * 1024 * 1024    # ~8 MiB per block
_VMEM_LIMIT_BYTES = 48 * 1024 * 1024     # 4 x 8 MiB buffers + headroom; fits all gens


# -----------------------------------------------------------------------------
# Primary path: true no-op identity (output aliased to input, no DMA, no compute)
# -----------------------------------------------------------------------------
def _identity_alias_kernel(x_ref, o_ref):
    # Output buffer is aliased to the input buffer; the data is already there.
    del x_ref, o_ref


@jax.jit
def identity_forward(x):
    return pl.pallas_call(
        _identity_alias_kernel,
        out_shape=jax.ShapeDtypeStruct(x.shape, x.dtype),
        in_specs=[pl.BlockSpec(memory_space=pl.ANY)],   # stay in HBM, no auto-DMA
        out_specs=pl.BlockSpec(memory_space=pl.ANY),
        input_output_aliases={0: 0},                    # out buffer == in buffer
        cost_estimate=pl.CostEstimate(flops=0, transcendentals=0,
                                      bytes_accessed=0),
    )(x)


# -----------------------------------------------------------------------------
# Secondary path: materializing copy (only if a fresh buffer is required)
# -----------------------------------------------------------------------------
def _identity_copy_kernel(x_ref, o_ref):
    o_ref[...] = x_ref[...]


def _block_rows(nrows, ncols, itemsize):
    """Rows per block targeting ~_TARGET_BLOCK_BYTES; multiple of 32 (safe for
    f32/bf16/int8 sublane tiling) or the full extent for small inputs."""
    target = _TARGET_BLOCK_BYTES // max(1, ncols * itemsize)
    target = max(32, target - target % 32)
    return nrows if nrows <= target else target


@jax.jit
def identity_copy(x):
    orig_shape = x.shape
    total = x.size
    if total == 0:
        return x
    itemsize = x.dtype.itemsize

    if total % _LANES == 0:
        # Lane-dense 2-D view: every vst is a full, unmasked 128-lane store.
        ncols = _LANES
    else:
        # Odd totals: keep the original trailing dim (stores may be masked);
        # the recommended Identity path is identity_forward() anyway.
        ncols = orig_shape[-1] if len(orig_shape) else 1
    nrows = total // ncols

    bm = _block_rows(nrows, ncols, itemsize)
    grid = (pl.cdiv(nrows, bm),)   # last block may be partial: OOB reads padded,
                                   # OOB writes dropped -> harmless for a copy

    x2 = x.reshape(nrows, ncols)   # contiguous reshape: no transpose, no pad
    out2 = pl.pallas_call(
        _identity_copy_kernel,
        out_shape=jax.ShapeDtypeStruct((nrows, ncols), x.dtype),
        grid=grid,
        in_specs=[pl.BlockSpec((bm, ncols), lambda i: (i, 0))],
        out_specs=pl.BlockSpec((bm, ncols), lambda i: (i, 0)),
        compiler_params=pltpu.CompilerParams(
            dimension_semantics=("parallel",),          # both TCs on v7x
            vmem_limit_bytes=_VMEM_LIMIT_BYTES),
        cost_estimate=pl.CostEstimate(flops=0, transcendentals=0,
                                      bytes_accessed=2 * total * itemsize),
    )(x2)
    return out2.reshape(orig_shape)


if __name__ == "__main__":
    key = jax.random.PRNGKey(0)
    x = jax.random.normal(key, (2, 4, 16, 16), jnp.float32)   # NCHW, small

    # Primary: aliased no-op identity.
    out = jax.block_until_ready(identity_forward(x))
    assert out.shape == x.shape, (out.shape, x.shape)
    assert out.dtype == x.dtype, (out.dtype, x.dtype)
    assert bool(jnp.array_equal(out, x))

    # Secondary: tuned copy kernel (fresh output buffer).
    out_copy = jax.block_until_ready(identity_copy(x))
    assert out_copy.shape == x.shape, (out_copy.shape, x.shape)
    assert out_copy.dtype == x.dtype, (out_copy.dtype, x.dtype)
    assert bool(jnp.array_equal(out_copy, x))

    print("KERNEL_OK")
</pallas_src>

<mosaic_0001>
module attributes {stable_mosaic.version = 11 : i64} {
  func.func @_identity_alias_kernel(%arg0: memref<2x4x16x16xf32, #tpu.memory_space<any>>, %arg1: memref<2x4x16x16xf32, #tpu.memory_space<any>>) attributes {dimension_semantics = [], scalar_prefetch = 0 : i64, scratch_operands = 0 : i64, tpu.core_type = #tpu.core_type<tc>} {
    return
  }
}

</mosaic_0001>

<llo_original>
// kernel: identity_forward.1
$region0: #{identity_forward.1}
  #allocation0 [shape = 'u32[]', space=smem, size = 0x4, offset = 0x4, fixed_abs, tag = 'smem constant byte address 0x4 - core index']
  #allocation1 [shape = 'u32[144,128]{1,0:T(1,128)}', space=vmem, size = 0x12000, scoped, tag = 'internal scratch']
  %s0 = inlined_call_operand.hbm [shape: f32[2,4,16,16], index: 0, kind: input, shape index: {}, may-alias: {0,1}]
  %s1 = inlined_call_operand.hbm [shape: f32[2,4,16,16], index: 1, kind: output, shape index: {}, may-alias: {0,1}]
  %s2 = sld [smem:[#allocation0]]
  $region2: #{identity_forward.1} parent=0
    _
  %s4 = ssub.s32 1, %s2
  %s5 = scalar_select 0, %s4, %s2

</llo_original>
